<compile_context>
chip_gen: v5e
topology: v5e:2x2
jax: 0.10.0
libtpu: 0.0.40
codegen_flags: <defaults>
</compile_context>

<pallas_src>
import jax
import jax.numpy as jnp
import numpy as np
from jax import lax
from jax.experimental import pallas as pl
from jax.experimental.pallas import tpu as pltpu

EPS = 1e-15  # matches torch_geometric.nn.dense.mincut_pool.EPS


def _mincut_pool_kernel(x_ref, adj_ref, mask_ref, w_ref, b_ref,
                        s_ref, xp_ref, ap_ref, stats_ref):
    """One graph per grid step: every ref is a per-batch 2-D tile."""
    x = x_ref[...]        # (N, F) f32
    adj = adj_ref[...]    # (N, N) f32
    mask = mask_ref[...]  # (N, 1) f32 (pre-expanded in wrapper -> pure VPU multiply)
    w_t = w_ref[...]      # (F, K) f32
    bias = b_ref[...]     # (1, K) f32

    N, F = x.shape
    K = w_t.shape[1]

    # --- GeneralLayer('linear'): one 2-D MXU matmul, kept f32 (it is the batch.s output).
    logits = jnp.dot(x, w_t, preferred_element_type=jnp.float32) + bias      # (N, K)
    s_ref[...] = logits.astype(s_ref.dtype)
    # NOTE: batch.s must keep shape (B, N, K); K < 128 lanes so these stores are masked.
    # Making them lane-dense would change the consumer contract, so we keep it.

    # --- softmax over clusters (f32 VPU/EUP; denominator via approx EUP reciprocal).
    m = jnp.max(logits, axis=-1, keepdims=True)
    e = jnp.exp(logits - m)
    s = e * pl.reciprocal(jnp.sum(e, axis=-1, keepdims=True), approx=True)   # (N, K)

    xm = x * mask                       # (N, F)
    sm = s * mask                       # (N, K)

    # --- pooling contractions: bf16 MXU operands, f32 accumulation, no materialized
    #     transposes (S^T * . expressed by contracting the leading node dim).
    TN = (((0,), (0,)), ((), ()))       # lhs^T @ rhs
    sm16 = sm.astype(jnp.bfloat16)
    xm16 = xm.astype(jnp.bfloat16)
    adj16 = adj.astype(jnp.bfloat16)

    out = lax.dot_general(sm16, xm16, TN, preferred_element_type=jnp.float32)   # S^T X    (K, F)
    a_s = jnp.dot(adj16, sm16, preferred_element_type=jnp.float32)              # A S      (N, K)
    out_adj = lax.dot_general(sm16, a_s.astype(jnp.bfloat16), TN,
                              preferred_element_type=jnp.float32)               # S^T A S  (K, K)
    ss = lax.dot_general(sm16, sm16, TN, preferred_element_type=jnp.float32)    # S^T S    (K, K)

    row = lax.broadcasted_iota(jnp.int32, (K, K), 0)
    col = lax.broadcasted_iota(jnp.int32, (K, K), 1)
    eye = (row == col).astype(jnp.float32)

    # --- MinCut loss components (per graph; sign + batch mean done in the wrapper so
    #     the batch grid axis stays fully parallel).
    mincut_num = jnp.sum(out_adj * eye)                                          # tr(S^T A S)
    d_flat = jnp.sum(adj, axis=-1, keepdims=True)                                # (N, 1) degrees
    mincut_den = jnp.sum(d_flat * jnp.sum(sm * sm, axis=-1, keepdims=True))      # tr(S^T D S)

    # --- orthogonality norm per graph.
    fro = jnp.sqrt(jnp.sum(ss * ss, axis=(-2, -1), keepdims=True))               # (1, 1)
    inv_fro = pl.reciprocal(jnp.maximum(fro, EPS), approx=True)                  # guard empty graphs
    diff = ss * inv_fro - eye * (1.0 / (K ** 0.5))
    ortho = jnp.sqrt(jnp.sum(diff * diff))

    # --- zero diagonal + symmetric degree normalization (reciprocal-then-multiply).
    out_adj = out_adj * (1.0 - eye)
    deg_r = jnp.sum(out_adj, axis=-1, keepdims=True)                             # (K, 1) row degrees
    # Same row degrees laid out along lanes (avoids an explicit (K,1)->(1,K) transpose).
    ones_row = jnp.ones((1, K), dtype=jnp.float32)
    deg_c = lax.dot_general(ones_row, out_adj, (((1,), (1,)), ((), ())),
                            preferred_element_type=jnp.float32)                  # (1, K)
    dinv_r = pl.reciprocal(jnp.sqrt(deg_r) + EPS, approx=False)
    dinv_c = pl.reciprocal(jnp.sqrt(deg_c) + EPS, approx=False)
    out_adj = out_adj * dinv_r * dinv_c

    xp_ref[...] = out.astype(xp_ref.dtype)
    ap_ref[...] = out_adj.astype(ap_ref.dtype)

    # --- lane-dense per-graph stats row: [mincut_num, mincut_den, ortho, 0, ...]
    lane = lax.broadcasted_iota(jnp.int32, (1, 128), 1)
    stats = (jnp.where(lane == 0, mincut_num, 0.0)
             + jnp.where(lane == 1, mincut_den, 0.0)
             + jnp.where(lane == 2, ortho, 0.0))
    stats_ref[...] = stats.astype(stats_ref.dtype)


@jax.jit
def dense_mincut_pool_forward(x, adj, mask, weight, bias):
    """Returns (s, x_pool, adj_pool, mc_loss, o_loss) — mirrors DenseMincutPool.forward."""
    B, N, F = x.shape
    K = weight.shape[0]

    w_t = jnp.transpose(weight)                    # (F, K)
    b2 = jnp.reshape(bias, (1, K))
    mask3 = mask.astype(x.dtype).reshape(B, N, 1)  # pre-expanded mask -> pure VPU multiply

    # Explicit VMEM budget: per-graph blocks, double-buffered, + headroom (v7x-safe cap).
    blk_bytes = 4 * (N * F + N * N + N + F * K + K + N * K + K * F + K * K + 128)
    vmem_limit = int(min(max(4 * blk_bytes + (8 << 20), 16 << 20), 64 << 20))
    # TODO(synk): beyond N ~ 2048 on v7x (64 MiB VMEM) the (1, N, N) adjacency block itself
    # would need tiling over N (or bf16 HBM storage); not needed at GraphGym dense-pool sizes.

    flops = 2 * B * N * (F * K + K * F + N * K + 2 * K * K)
    bytes_accessed = 4 * (B * N * F + B * N * N + B * N + F * K + K
                          + B * N * K + B * K * F + B * K * K + B * 128)
    transcendentals = B * (N * K + N + 2 * K + 8)

    grid_spec = pltpu.PrefetchScalarGridSpec(
        num_scalar_prefetch=0,
        grid=(B,),
        in_specs=[
            pl.BlockSpec((None, N, F), lambda b: (b, 0, 0)),    # x
            pl.BlockSpec((None, N, N), lambda b: (b, 0, 0)),    # adj
            pl.BlockSpec((None, N, 1), lambda b: (b, 0, 0)),    # mask (pre-expanded)
            pl.BlockSpec((F, K), lambda b: (0, 0)),             # W^T (shared across grid)
            pl.BlockSpec((1, K), lambda b: (0, 0)),             # bias (shared across grid)
        ],
        out_specs=(
            pl.BlockSpec((None, N, K), lambda b: (b, 0, 0)),    # s (pre-softmax logits)
            pl.BlockSpec((None, K, F), lambda b: (b, 0, 0)),    # pooled x
            pl.BlockSpec((None, K, K), lambda b: (b, 0, 0)),    # pooled adj
            pl.BlockSpec((None, 1, 128), lambda b: (b, 0, 0)),  # per-graph loss stats
        ),
    )

    out_shapes = (
        jax.ShapeDtypeStruct((B, N, K), x.dtype),
        jax.ShapeDtypeStruct((B, K, F), x.dtype),
        jax.ShapeDtypeStruct((B, K, K), x.dtype),
        jax.ShapeDtypeStruct((B, 1, 128), jnp.float32),
    )

    s, xp, ap, stats = pl.pallas_call(
        _mincut_pool_kernel,
        out_shape=out_shapes,
        grid_spec=grid_spec,
        compiler_params=pltpu.CompilerParams(
            dimension_semantics=("parallel",),
            vmem_limit_bytes=vmem_limit),
        cost_estimate=pl.CostEstimate(flops=flops,
                                      transcendentals=transcendentals,
                                      bytes_accessed=bytes_accessed),
    )(x, adj, mask3, w_t, b2)

    mc_num = stats[:, 0, 0]
    mc_den = jnp.maximum(stats[:, 0, 1], EPS)   # guard isolated / fully-masked graphs (0/0 -> 0)
    mc_loss = jnp.mean(-(mc_num / mc_den))
    o_loss = jnp.mean(stats[:, 0, 2])
    return s, xp, ap, mc_loss, o_loss


def _reference(x, adj, mask, weight, bias):
    """Pure-JAX f32 mirror of the PyTorch forward (correctness check)."""
    hi = lax.Precision.HIGHEST
    s = jnp.einsum('bnf,kf->bnk', x, weight, precision=hi) + bias
    sm = jax.nn.softmax(s, axis=-1)
    m = mask.astype(x.dtype)[:, :, None]
    xm, smm = x * m, sm * m
    out = jnp.einsum('bnk,bnf->bkf', smm, xm, precision=hi)
    out_adj = jnp.einsum('bnk,bnm,bmc->bkc', smm, adj, smm, precision=hi)
    K = weight.shape[0]
    num = jnp.trace(out_adj, axis1=-2, axis2=-1)
    d_flat = adj.sum(-1)
    den = jnp.sum(d_flat * jnp.sum(smm * smm, -1), -1)
    mc = jnp.mean(-(num / den))
    ss = jnp.einsum('bnk,bnc->bkc', smm, smm, precision=hi)
    ss_fro = jnp.linalg.norm(ss, axis=(-2, -1), keepdims=True)
    i_s = jnp.eye(K) / jnp.sqrt(K)
    o = jnp.mean(jnp.linalg.norm(ss / ss_fro - i_s, axis=(-2, -1)))
    out_adj = out_adj * (1.0 - jnp.eye(K)[None])
    d = jnp.sqrt(out_adj.sum(-1)) + EPS
    out_adj = out_adj / d[:, None, :] / d[:, :, None]
    return s, out, out_adj, mc, o


if __name__ == "__main__":
    key = jax.random.PRNGKey(0)
    B, N, F, K = 2, 16, 32, 8         # batch, nodes, dim_in, n_clusters
    k1, k2, k3, k4 = jax.random.split(key, 4)

    x = jax.random.normal(k1, (B, N, F), dtype=jnp.float32)

    # random symmetric adjacency, zero diagonal
    a = (jax.random.uniform(k2, (B, N, N)) < 0.3).astype(jnp.float32)
    adj = jnp.maximum(a, jnp.swapaxes(a, 1, 2)) * (1.0 - jnp.eye(N)[None])

    # mask: graph 0 has all 16 nodes, graph 1 has 12 valid nodes
    num_nodes = jnp.array([N, 12])
    mask = jnp.arange(N)[None, :] < num_nodes[:, None]
    mask_f = mask.astype(jnp.float32)
    adj = adj * mask_f[:, :, None] * mask_f[:, None, :]

    # deterministic nn.Linear(F, K) parameters (PyTorch layout: weight (K, F))
    weight = 0.1 * jax.random.normal(k3, (K, F), dtype=jnp.float32)
    bias = 0.01 * jax.random.normal(k4, (K,), dtype=jnp.float32)

    s, x_pool, adj_pool, mc, o = dense_mincut_pool_forward(x, adj, mask, weight, bias)
    jax.tree_util.tree_map(jax.block_until_ready, (s, x_pool, adj_pool, mc, o))

    # correctness check against pure-JAX f32 reference
    s_r, xp_r, ap_r, mc_r, o_r = _reference(x, adj, mask, weight, bias)
    # s comes from the f32 linear path:
    np.testing.assert_allclose(np.asarray(s), np.asarray(s_r), rtol=1e-2, atol=2e-3)
    # pooled tensors/losses go through bf16 MXU operands (f32 accumulation): ~1% budget.
    np.testing.assert_allclose(np.asarray(x_pool), np.asarray(xp_r), rtol=2e-2, atol=1e-2)
    np.testing.assert_allclose(np.asarray(adj_pool), np.asarray(ap_r), rtol=2e-2, atol=1e-2)
    np.testing.assert_allclose(float(mc), float(mc_r), rtol=2e-2, atol=5e-3)
    np.testing.assert_allclose(float(o), float(o_r), rtol=2e-2, atol=5e-3)

    print("KERNEL_OK")
</pallas_src>

<mosaic_0001>
module attributes {stable_mosaic.version = 11 : i64} {
  func.func @_mincut_pool_kernel(%arg0: i32, %arg1: memref<1x16x32xf32, #tpu.memory_space<vmem>>, %arg2: memref<1x16x16xf32, #tpu.memory_space<vmem>>, %arg3: memref<1x16x1xf32, #tpu.memory_space<vmem>>, %arg4: memref<32x8xf32, #tpu.memory_space<vmem>>, %arg5: memref<1x8xf32, #tpu.memory_space<vmem>>, %arg6: memref<1x16x8xf32, #tpu.memory_space<vmem>>, %arg7: memref<1x8x32xf32, #tpu.memory_space<vmem>>, %arg8: memref<1x8x8xf32, #tpu.memory_space<vmem>>, %arg9: memref<1x1x128xf32, #tpu.memory_space<vmem>>) attributes {dimension_semantics = [#tpu.dimension_semantics<parallel>], iteration_bounds = array<i64: 2>, scalar_prefetch = 0 : i64, scratch_operands = 0 : i64, tpu.core_type = #tpu.core_type<tc>, window_params = [{transform_indices = @transform_0, window_bounds = array<i64: 1, 16, 32>}, {transform_indices = @transform_1, window_bounds = array<i64: 1, 16, 16>}, {transform_indices = @transform_2, window_bounds = array<i64: 1, 16, 1>}, {pipeline_mode = #tpu.pipeline_mode<synchronous>, transform_indices = @transform_3, window_bounds = array<i64: 32, 8>}, {pipeline_mode = #tpu.pipeline_mode<synchronous>, transform_indices = @transform_4, window_bounds = array<i64: 1, 8>}, {transform_indices = @transform_5, window_bounds = array<i64: 1, 16, 8>}, {transform_indices = @transform_6, window_bounds = array<i64: 1, 8, 32>}, {transform_indices = @transform_7, window_bounds = array<i64: 1, 8, 8>}, {transform_indices = @transform_8, window_bounds = array<i64: 1, 1, 128>}]} {
    %c0 = arith.constant 0 : index
    %c0_0 = arith.constant 0 : index
    %c0_1 = arith.constant 0 : index
    %0 = vector.load %arg1[%c0, %c0_0, %c0_1] : memref<1x16x32xf32, #tpu.memory_space<vmem>>, vector<1x16x32xf32>
    %1 = vector.shape_cast %0 : vector<1x16x32xf32> to vector<16x32xf32>
    %c0_2 = arith.constant 0 : index
    %c0_3 = arith.constant 0 : index
    %c0_4 = arith.constant 0 : index
    %2 = vector.load %arg2[%c0_2, %c0_3, %c0_4] : memref<1x16x16xf32, #tpu.memory_space<vmem>>, vector<1x16x16xf32>
    %3 = vector.shape_cast %2 : vector<1x16x16xf32> to vector<16x16xf32>
    %c0_5 = arith.constant 0 : index
    %c0_6 = arith.constant 0 : index
    %c0_7 = arith.constant 0 : index
    %4 = vector.load %arg3[%c0_5, %c0_6, %c0_7] : memref<1x16x1xf32, #tpu.memory_space<vmem>>, vector<1x16x1xf32>
    %5 = vector.shape_cast %4 : vector<1x16x1xf32> to vector<16x1xf32>
    %c0_8 = arith.constant 0 : index
    %c0_9 = arith.constant 0 : index
    %6 = vector.load %arg4[%c0_8, %c0_9] : memref<32x8xf32, #tpu.memory_space<vmem>>, vector<32x8xf32>
    %c0_10 = arith.constant 0 : index
    %c0_11 = arith.constant 0 : index
    %7 = vector.load %arg5[%c0_10, %c0_11] : memref<1x8xf32, #tpu.memory_space<vmem>>, vector<1x8xf32>
    %cst = arith.constant dense<0.000000e+00> : vector<16x8xf32>
    %8 = tpu.matmul %1, %6, %cst {dimension_numbers = #tpu.dot_dimension_numbers<[1], [0], [0], [1], [0, 0, 1, 1], [], []>} : vector<16x32xf32>, vector<32x8xf32>, vector<16x8xf32> -> vector<16x8xf32>
    %9 = vector.broadcast %7 : vector<1x8xf32> to vector<16x8xf32>
    %10 = arith.addf %8, %9 : vector<16x8xf32>
    %c0_12 = arith.constant 0 : index
    %c0_13 = arith.constant 0 : index
    %c0_14 = arith.constant 0 : index
    %11 = vector.load %arg6[%c0_12, %c0_13, %c0_14] : memref<1x16x8xf32, #tpu.memory_space<vmem>>, vector<1x16x8xf32>
    %12 = vector.shape_cast %11 : vector<1x16x8xf32> to vector<16x8xf32>
    %13 = vector.shape_cast %10 : vector<16x8xf32> to vector<1x16x8xf32>
    tpu.vector_store %arg6[%c0_12, %c0_13, %c0_14], %13 {strides = array<i32>} : memref<1x16x8xf32, #tpu.memory_space<vmem>>, vector<1x16x8xf32>,
    %cst_15 = arith.constant dense<0xFF800000> : vector<16xf32>
    %14 = vector.multi_reduction <maximumf>, %10, %cst_15 [1] : vector<16x8xf32> to vector<16xf32>
    %15 = vector.shape_cast %14 : vector<16xf32> to vector<16x1xf32>
    %16 = vector.broadcast %15 : vector<16x1xf32> to vector<16x8xf32>
    %17 = arith.subf %10, %16 : vector<16x8xf32>
    %18 = math.exp %17 : vector<16x8xf32>
    %cst_16 = arith.constant dense<0.000000e+00> : vector<16xf32>
    %19 = vector.multi_reduction <add>, %18, %cst_16 [1] : vector<16x8xf32> to vector<16xf32>
    %20 = vector.shape_cast %19 : vector<16xf32> to vector<16x1xf32>
    %21 = tpu.reciprocal %20 {approx = true} : vector<16x1xf32> -> vector<16x1xf32>
    %22 = vector.broadcast %21 : vector<16x1xf32> to vector<16x8xf32>
    %23 = arith.mulf %18, %22 : vector<16x8xf32>
    %24 = vector.broadcast %5 : vector<16x1xf32> to vector<16x32xf32>
    %25 = arith.mulf %1, %24 : vector<16x32xf32>
    %26 = vector.broadcast %5 : vector<16x1xf32> to vector<16x8xf32>
    %27 = arith.mulf %23, %26 : vector<16x8xf32>
    %28 = arith.truncf %27 : vector<16x8xf32> to vector<16x8xbf16>
    %29 = arith.truncf %25 : vector<16x32xf32> to vector<16x32xbf16>
    %30 = arith.truncf %3 : vector<16x16xf32> to vector<16x16xbf16>
    %cst_17 = arith.constant dense<0.000000e+00> : vector<8x32xf32>
    %31 = tpu.matmul %28, %29, %cst_17 {dimension_numbers = #tpu.dot_dimension_numbers<[0], [0], [1], [1], [0, 1, 1, 1], [], []>} : vector<16x8xbf16>, vector<16x32xbf16>, vector<8x32xf32> -> vector<8x32xf32>
    %cst_18 = arith.constant dense<0.000000e+00> : vector<16x8xf32>
    %32 = tpu.matmul %30, %28, %cst_18 {dimension_numbers = #tpu.dot_dimension_numbers<[1], [0], [0], [1], [0, 0, 1, 1], [], []>} : vector<16x16xbf16>, vector<16x8xbf16>, vector<16x8xf32> -> vector<16x8xf32>
    %33 = arith.truncf %32 : vector<16x8xf32> to vector<16x8xbf16>
    %cst_19 = arith.constant dense<0.000000e+00> : vector<8x8xf32>
    %34 = tpu.matmul %28, %33, %cst_19 {dimension_numbers = #tpu.dot_dimension_numbers<[0], [0], [1], [1], [0, 1, 1, 1], [], []>} : vector<16x8xbf16>, vector<16x8xbf16>, vector<8x8xf32> -> vector<8x8xf32>
    %cst_20 = arith.constant dense<0.000000e+00> : vector<8x8xf32>
    %35 = tpu.matmul %28, %28, %cst_20 {dimension_numbers = #tpu.dot_dimension_numbers<[0], [0], [1], [1], [0, 1, 1, 1], [], []>} : vector<16x8xbf16>, vector<16x8xbf16>, vector<8x8xf32> -> vector<8x8xf32>
    %36 = tpu.iota {dimensions = array<i32: 0>} : vector<8x8xi32>
    %37 = tpu.iota {dimensions = array<i32: 1>} : vector<8x8xi32>
    %38 = arith.cmpi eq, %36, %37 : vector<8x8xi32>
    %39 = arith.extui %38 : vector<8x8xi1> to vector<8x8xi32>
    %40 = arith.sitofp %39 : vector<8x8xi32> to vector<8x8xf32>
    %41 = arith.mulf %34, %40 : vector<8x8xf32>
    %42 = vector.shape_cast %41 : vector<8x8xf32> to vector<1x8x8xf32>
    %cst_21 = arith.constant dense<0.000000e+00> : vector<1xf32>
    %43 = vector.multi_reduction <add>, %42, %cst_21 [1, 2] : vector<1x8x8xf32> to vector<1xf32>
    %44 = vector.shape_cast %43 : vector<1xf32> to vector<1x1x1xf32>
    %45 = vector.extract %44[0, 0, 0] : f32 from vector<1x1x1xf32>
    %cst_22 = arith.constant dense<0.000000e+00> : vector<16xf32>
    %46 = vector.multi_reduction <add>, %3, %cst_22 [1] : vector<16x16xf32> to vector<16xf32>
    %47 = vector.shape_cast %46 : vector<16xf32> to vector<16x1xf32>
    %48 = arith.mulf %27, %27 : vector<16x8xf32>
    %cst_23 = arith.constant dense<0.000000e+00> : vector<16xf32>
    %49 = vector.multi_reduction <add>, %48, %cst_23 [1] : vector<16x8xf32> to vector<16xf32>
    %50 = vector.shape_cast %49 : vector<16xf32> to vector<16x1xf32>
    %51 = arith.mulf %47, %50 : vector<16x1xf32>
    %52 = vector.shape_cast %51 : vector<16x1xf32> to vector<1x16x1xf32>
    %cst_24 = arith.constant dense<0.000000e+00> : vector<1xf32>
    %53 = vector.multi_reduction <add>, %52, %cst_24 [1, 2] : vector<1x16x1xf32> to vector<1xf32>
    %54 = vector.shape_cast %53 : vector<1xf32> to vector<1x1x1xf32>
    %55 = vector.extract %54[0, 0, 0] : f32 from vector<1x1x1xf32>
    %56 = arith.mulf %35, %35 : vector<8x8xf32>
    %57 = vector.shape_cast %56 : vector<8x8xf32> to vector<1x8x8xf32>
    %cst_25 = arith.constant dense<0.000000e+00> : vector<1xf32>
    %58 = vector.multi_reduction <add>, %57, %cst_25 [1, 2] : vector<1x8x8xf32> to vector<1xf32>
    %59 = vector.shape_cast %58 : vector<1xf32> to vector<1x1x1xf32>
    %60 = vector.extract %59[0, 0, 0] : f32 from vector<1x1x1xf32>
    %61 = vector.broadcast %60 : f32 to vector<1x1xf32>
    %62 = math.sqrt %61 : vector<1x1xf32>
    %cst_26 = arith.constant 1.000000e-15 : f32
    %63 = vector.broadcast %cst_26 : f32 to vector<1x1xf32>
    %64 = arith.maximumf %62, %63 : vector<1x1xf32>
    %65 = tpu.reciprocal %64 {approx = true} : vector<1x1xf32> -> vector<1x1xf32>
    %66 = vector.broadcast %65 : vector<1x1xf32> to vector<8x8xf32>
    %67 = arith.mulf %35, %66 : vector<8x8xf32>
    %cst_27 = arith.constant 0.353553385 : f32
    %68 = vector.broadcast %cst_27 : f32 to vector<8x8xf32>
    %69 = arith.mulf %40, %68 : vector<8x8xf32>
    %70 = arith.subf %67, %69 : vector<8x8xf32>
    %71 = arith.mulf %70, %70 : vector<8x8xf32>
    %72 = vector.shape_cast %71 : vector<8x8xf32> to vector<1x8x8xf32>
    %cst_28 = arith.constant dense<0.000000e+00> : vector<1xf32>
    %73 = vector.multi_reduction <add>, %72, %cst_28 [1, 2] : vector<1x8x8xf32> to vector<1xf32>
    %74 = vector.shape_cast %73 : vector<1xf32> to vector<1x1x1xf32>
    %75 = vector.extract %74[0, 0, 0] : f32 from vector<1x1x1xf32>
    %76 = math.sqrt %75 : f32
    %cst_29 = arith.constant 1.000000e+00 : f32
    %77 = vector.broadcast %cst_29 : f32 to vector<8x8xf32>
    %78 = arith.subf %77, %40 : vector<8x8xf32>
    %79 = arith.mulf %34, %78 : vector<8x8xf32>
    %cst_30 = arith.constant dense<0.000000e+00> : vector<8xf32>
    %80 = vector.multi_reduction <add>, %79, %cst_30 [1] : vector<8x8xf32> to vector<8xf32>
    %81 = vector.shape_cast %80 : vector<8xf32> to vector<8x1xf32>
    %cst_31 = arith.constant 1.000000e+00 : f32
    %82 = vector.broadcast %cst_31 : f32 to vector<1x8xf32>
    %cst_32 = arith.constant dense<0.000000e+00> : vector<1x8xf32>
    %83 = tpu.matmul %82, %79, %cst_32 {dimension_numbers = #tpu.dot_dimension_numbers<[1], [1], [0], [0], [0, 0, 1, 0], [], []>} : vector<1x8xf32>, vector<8x8xf32>, vector<1x8xf32> -> vector<1x8xf32>
    %84 = math.sqrt %81 : vector<8x1xf32>
    %cst_33 = arith.constant 1.000000e-15 : f32
    %85 = vector.broadcast %cst_33 : f32 to vector<8x1xf32>
    %86 = arith.addf %84, %85 : vector<8x1xf32>
    %87 = tpu.reciprocal %86 : vector<8x1xf32> -> vector<8x1xf32>
    %88 = math.sqrt %83 : vector<1x8xf32>
    %cst_34 = arith.constant 1.000000e-15 : f32
    %89 = vector.broadcast %cst_34 : f32 to vector<1x8xf32>
    %90 = arith.addf %88, %89 : vector<1x8xf32>
    %91 = tpu.reciprocal %90 : vector<1x8xf32> -> vector<1x8xf32>
    %92 = vector.broadcast %87 : vector<8x1xf32> to vector<8x8xf32>
    %93 = arith.mulf %79, %92 : vector<8x8xf32>
    %94 = vector.broadcast %91 : vector<1x8xf32> to vector<8x8xf32>
    %95 = arith.mulf %93, %94 : vector<8x8xf32>
    %c0_35 = arith.constant 0 : index
    %c0_36 = arith.constant 0 : index
    %c0_37 = arith.constant 0 : index
    %96 = vector.load %arg7[%c0_35, %c0_36, %c0_37] : memref<1x8x32xf32, #tpu.memory_space<vmem>>, vector<1x8x32xf32>
    %97 = vector.shape_cast %96 : vector<1x8x32xf32> to vector<8x32xf32>
    %98 = vector.shape_cast %31 : vector<8x32xf32> to vector<1x8x32xf32>
    tpu.vector_store %arg7[%c0_35, %c0_36, %c0_37], %98 {strides = array<i32>} : memref<1x8x32xf32, #tpu.memory_space<vmem>>, vector<1x8x32xf32>,
    %c0_38 = arith.constant 0 : index
    %c0_39 = arith.constant 0 : index
    %c0_40 = arith.constant 0 : index
    %99 = vector.load %arg8[%c0_38, %c0_39, %c0_40] : memref<1x8x8xf32, #tpu.memory_space<vmem>>, vector<1x8x8xf32>
    %100 = vector.shape_cast %99 : vector<1x8x8xf32> to vector<8x8xf32>
    %101 = vector.shape_cast %95 : vector<8x8xf32> to vector<1x8x8xf32>
    tpu.vector_store %arg8[%c0_38, %c0_39, %c0_40], %101 {strides = array<i32>} : memref<1x8x8xf32, #tpu.memory_space<vmem>>, vector<1x8x8xf32>,
    %102 = tpu.iota {dimensions = array<i32: 1>} : vector<1x128xi32>
    %c0_i32 = arith.constant 0 : i32
    %103 = vector.broadcast %c0_i32 : i32 to vector<1x128xi32>
    %104 = arith.cmpi eq, %102, %103 : vector<1x128xi32>
    %cst_41 = arith.constant 0.000000e+00 : f32
    %105 = vector.broadcast %45 : f32 to vector<1x128xf32>
    %106 = vector.broadcast %cst_41 : f32 to vector<1x128xf32>
    %107 = arith.select %104, %105, %106 : vector<1x128xi1>, vector<1x128xf32>
    %c1_i32 = arith.constant 1 : i32
    %108 = vector.broadcast %c1_i32 : i32 to vector<1x128xi32>
    %109 = arith.cmpi eq, %102, %108 : vector<1x128xi32>
    %cst_42 = arith.constant 0.000000e+00 : f32
    %110 = vector.broadcast %55 : f32 to vector<1x128xf32>
    %111 = vector.broadcast %cst_42 : f32 to vector<1x128xf32>
    %112 = arith.select %109, %110, %111 : vector<1x128xi1>, vector<1x128xf32>
    %113 = arith.addf %107, %112 : vector<1x128xf32>
    %c2_i32 = arith.constant 2 : i32
    %114 = vector.broadcast %c2_i32 : i32 to vector<1x128xi32>
    %115 = arith.cmpi eq, %102, %114 : vector<1x128xi32>
    %cst_43 = arith.constant 0.000000e+00 : f32
    %116 = vector.broadcast %76 : f32 to vector<1x128xf32>
    %117 = vector.broadcast %cst_43 : f32 to vector<1x128xf32>
    %118 = arith.select %115, %116, %117 : vector<1x128xi1>, vector<1x128xf32>
    %119 = arith.addf %113, %118 : vector<1x128xf32>
    %c0_44 = arith.constant 0 : index
    %c0_45 = arith.constant 0 : index
    %c0_46 = arith.constant 0 : index
    %120 = vector.load %arg9[%c0_44, %c0_45, %c0_46] : memref<1x1x128xf32, #tpu.memory_space<vmem>>, vector<1x1x128xf32>
    %121 = vector.shape_cast %120 : vector<1x1x128xf32> to vector<1x128xf32>
    %122 = vector.shape_cast %119 : vector<1x128xf32> to vector<1x1x128xf32>
    tpu.vector_store %arg9[%c0_44, %c0_45, %c0_46], %122 {strides = array<i32>} : memref<1x1x128xf32, #tpu.memory_space<vmem>>, vector<1x1x128xf32>,
    return
  }
  func.func @transform_0(%arg0: i32) -> (i32, i32, i32) {
    %c0_i32 = arith.constant 0 : i32
    %c0_i32_0 = arith.constant 0 : i32
    %c0_i32_1 = arith.constant 0 : i32
    return %arg0, %c0_i32, %c0_i32_0 : i32, i32, i32
  }
  func.func @transform_1(%arg0: i32) -> (i32, i32, i32) {
    %c0_i32 = arith.constant 0 : i32
    %c0_i32_0 = arith.constant 0 : i32
    %c0_i32_1 = arith.constant 0 : i32
    return %arg0, %c0_i32, %c0_i32_0 : i32, i32, i32
  }
  func.func @transform_2(%arg0: i32) -> (i32, i32, i32) {
    %c0_i32 = arith.constant 0 : i32
    %c0_i32_0 = arith.constant 0 : i32
    %c0_i32_1 = arith.constant 0 : i32
    return %arg0, %c0_i32, %c0_i32_0 : i32, i32, i32
  }
  func.func @transform_3(%arg0: i32) -> (i32, i32) {
    %c0_i32 = arith.constant 0 : i32
    %c0_i32_0 = arith.constant 0 : i32
    %c0_i32_1 = arith.constant 0 : i32
    return %c0_i32, %c0_i32_0 : i32, i32
  }
  func.func @transform_4(%arg0: i32) -> (i32, i32) {
    %c0_i32 = arith.constant 0 : i32
    %c0_i32_0 = arith.constant 0 : i32
    %c0_i32_1 = arith.constant 0 : i32
    return %c0_i32, %c0_i32_0 : i32, i32
  }
  func.func @transform_5(%arg0: i32) -> (i32, i32, i32) {
    %c0_i32 = arith.constant 0 : i32
    %c0_i32_0 = arith.constant 0 : i32
    %c0_i32_1 = arith.constant 0 : i32
    return %arg0, %c0_i32, %c0_i32_0 : i32, i32, i32
  }
  func.func @transform_6(%arg0: i32) -> (i32, i32, i32) {
    %c0_i32 = arith.constant 0 : i32
    %c0_i32_0 = arith.constant 0 : i32
    %c0_i32_1 = arith.constant 0 : i32
    return %arg0, %c0_i32, %c0_i32_0 : i32, i32, i32
  }
  func.func @transform_7(%arg0: i32) -> (i32, i32, i32) {
    %c0_i32 = arith.constant 0 : i32
    %c0_i32_0 = arith.constant 0 : i32
    %c0_i32_1 = arith.constant 0 : i32
    return %arg0, %c0_i32, %c0_i32_0 : i32, i32, i32
  }
  func.func @transform_8(%arg0: i32) -> (i32, i32, i32) {
    %c0_i32 = arith.constant 0 : i32
    %c0_i32_0 = arith.constant 0 : i32
    %c0_i32_1 = arith.constant 0 : i32
    return %arg0, %c0_i32, %c0_i32_0 : i32, i32, i32
  }
}

</mosaic_0001>

<llo_original>
// kernel: dense_mincut_pool_forward.1
$region0: #{dense_mincut_pool_forward.1}
  #allocation0 [shape = 'u32[]', space=smem, size = 0x4, offset = 0x4, fixed_abs, tag = 'smem constant byte address 0x4 - core index']
  #allocation1 [shape = 'u32[72,128]{1,0:T(1,128)}', space=vmem, size = 0x9000, scoped, tag = 'internal scratch']
  %s0 = inlined_call_operand.vmem [shape: f32[2,16,32], index: 0, kind: input, shape index: {}]
  %s1 = inlined_call_operand.vmem [shape: f32[2,16,16], index: 1, kind: input, shape index: {}]
  %s2 = inlined_call_operand.vmem [shape: f32[2,16,1], index: 2, kind: input, shape index: {}]
  %s3 = inlined_call_operand.vmem [shape: f32[32,8], index: 3, kind: input, shape index: {}]
  %s4 = inlined_call_operand.vmem [shape: f32[1,8], index: 4, kind: input, shape index: {}]
  %s5 = inlined_call_operand.vmem [shape: f32[2,16,8], index: 5, kind: output, shape index: {0}]
  %s6 = inlined_call_operand.hbm [shape: f32[2,8,32], index: 6, kind: output, shape index: {1}]
  %s7 = inlined_call_operand.hbm [shape: f32[2,8,8], index: 7, kind: output, shape index: {2}]
  %s8 = inlined_call_operand.vmem [shape: f32[2,1,128], index: 8, kind: output, shape index: {3}]
  %9 = xla_tuple %s5, %s6, %s7, %s8
  %s10 = sld [smem:[#allocation0]]
  $region77: #{dense_mincut_pool_forward.1} parent=0
    _
  %s12 = ssub.s32 1, %s10
  %s13 = scalar_select 0, %s12, %s10
  $region1: #{dense_mincut_pool_forward.1} parent=0
    #allocation2 [shape = 'u8[8192]{0}', space=vmem, size = 0x2000, scoped, tag = 'output window, operand 1']
    #allocation3 [shape = 's32[2]{0}', space=sflag, size = 0x8, scoped, tag = 'scoped memory for dense_mincut_pool_forward.1']
    #allocation4 [shape = 'u8[8192]{0}', space=vmem, size = 0x2000, scoped, tag = 'output window, operand 2']
    #allocation5 [shape = 's32[2]{0}', space=sflag, size = 0x8, scoped, tag = 'scoped memory for dense_mincut_pool_forward.1']
    %14 = vsyncpa [#allocation3], 0
    %s15 = scalar_lea.sflag [#allocation3], 1
    %16 = vsyncpa %s15, 0
    %17 = vsyncpa [#allocation5], 0
    %s18 = scalar_lea.sflag [#allocation5], 1
    %19 = vsyncpa %s18, 0
    loop: start=0, step=1, limit=4
    $region2: #{dense_mincut_pool_forward.1} parent=1 // loop_pre_header
      _
    $region3: #{dense_mincut_pool_forward.1} parent=1 // loop_header
      %s21 = sphi 0, %s25
      %p22 = scmp.ge.s32.totalorder %s21, 4
      %s31 = sphi 0, %s33
      %s34 = sphi 0, %s31
      %s35 = sphi 0, %s34
      %s51 = sphi 0, %s35
      %s57 = sphi 0, %s59
      %s60 = sphi 0, %s57
      %s61 = sphi 0, %s60
      %s77 = sphi 0, %s61
      %s83 = sphi 0, %s85
      %s86 = sphi 0, %s83
      %s87 = sphi 0, %s86
      %s103 = sphi 0, %s87
      %s107 = sphi 0, %s107
      %s109 = sphi 0, %s107
      %s110 = sphi 0, %s109
      %s124 = sphi 0, %s110
      %s128 = sphi 0, %s128
      %s130 = sphi 0, %s128
      %s131 = sphi 0, %s130
      %s145 = sphi 0, %s131
      %s151 = sphi 0, %s153
      %s154 = sphi 0, %s151
      %s155 = sphi 0, %s154
      %s171 = sphi 0, %s155
      %s177 = sphi 0, %s179
      %s180 = sphi 0, %s177
      %s181 = sphi 0, %s180
      %s197 = sphi 0, %s181
      %s203 = sphi 0, %s205
      %s206 = sphi 0, %s203
      %s207 = sphi 0, %s206
      %s223 = sphi 0, %s207
      %s229 = sphi 0, %s231
      %s232 = sphi 0, %s229
      %s233 = sphi 0, %s232
      %s249 = sphi 0, %s233
    $region4: #{dense_mincut_pool_forward.1} parent=1 // loop_header_branch
      %24 = sbr.rel (%p22) target = $region8
    $region5: #{dense_mincut_pool_forward.1} parent=1 // loop_body
      %s26 = ssub.s32 %s21, 1
      %s27 = ssub.s32 %s21, 2
      %s28 = sadd.s32 %s21, 1
      %s29 = ssub.s32 %s21, %s28
      %p30 = scmp.eq.s32.totalorder %s29, 0
      %s32 = sadd.s32 %s31, 1
      %s33 = scalar_select %p30, %s31, %s32
      %p36 = pneg %p30
      %p37 = scmp.eq.s32.totalorder %s21, 1
      %p38 = por %p36, %p37
      %p39 = scmp.ne.s32.totalorder %s31, %s34
      %p40 = scmp.eq.s32.totalorder %s21, 0
      %p41 = por %p39, %p40
      %p42 = scmp.ne.s32.totalorder %s31, %s34
      %p43 = scmp.eq.s32.totalorder %s26, 1
      %p44 = por %p42, %p43
      %p45 = scmp.ne.s32.totalorder %s34, %s35
      %p46 = scmp.eq.s32.totalorder %s26, 0
      %p47 = por %p45, %p46
      %p48 = scmp.ne.s32.totalorder %s34, %s35
      %p49 = scmp.eq.s32.totalorder %s27, 1
      %p50 = por %p48, %p49
      %p52 = scmp.ne.s32.totalorder %s35, %s51
      %p53 = scmp.eq.s32.totalorder %s27, 0
      %p54 = por %p52, %p53
      %s55 = ssub.s32 %s21, %s28
      %p56 = scmp.eq.s32.totalorder %s55, 0
      %s58 = sadd.s32 %s57, 1
      %s59 = scalar_select %p56, %s57, %s58
      %p62 = pneg %p56
      %p63 = scmp.eq.s32.totalorder %s21, 1
      %p64 = por %p62, %p63
      %p65 = scmp.ne.s32.totalorder %s57, %s60
      %p66 = scmp.eq.s32.totalorder %s21, 0
      %p67 = por %p65, %p66
      %p68 = scmp.ne.s32.totalorder %s57, %s60
      %p69 = scmp.eq.s32.totalorder %s26, 1
      %p70 = por %p68, %p69
      %p71 = scmp.ne.s32.totalorder %s60, %s61
      %p72 = scmp.eq.s32.totalorder %s26, 0
      %p73 = por %p71, %p72
      %p74 = scmp.ne.s32.totalorder %s60, %s61
      %p75 = scmp.eq.s32.totalorder %s27, 1
      %p76 = por %p74, %p75
      %p78 = scmp.ne.s32.totalorder %s61, %s77
      %p79 = scmp.eq.s32.totalorder %s27, 0
      %p80 = por %p78, %p79
      %s81 = ssub.s32 %s21, %s28
      %p82 = scmp.eq.s32.totalorder %s81, 0
      %s84 = sadd.s32 %s83, 1
      %s85 = scalar_select %p82, %s83, %s84
      %p88 = pneg %p82
      %p89 = scmp.eq.s32.totalorder %s21, 1
      %p90 = por %p88, %p89
      %p91 = scmp.ne.s32.totalorder %s83, %s86
      %p92 = scmp.eq.s32.totalorder %s21, 0
      %p93 = por %p91, %p92
      %p94 = scmp.ne.s32.totalorder %s83, %s86
      %p95 = scmp.eq.s32.totalorder %s26, 1
      %p96 = por %p94, %p95
      %p97 = scmp.ne.s32.totalorder %s86, %s87
      %p98 = scmp.eq.s32.totalorder %s26, 0
      %p99 = por %p97, %p98
      %p100 = scmp.ne.s32.totalorder %s86, %s87
      %p101 = scmp.eq.s32.totalorder %s27, 1
      %p102 = por %p100, %p101
      %p104 = scmp.ne.s32.totalorder %s87, %s103
      %p105 = scmp.eq.s32.totalorder %s27, 0
      %p106 = por %p104, %p105
      %s108 = sadd.s32 %s107, 1
      %p111 = scmp.eq.s32.totalorder %s21, 1
      %p112 = scmp.ne.s32.totalorder %s107, %s109
      %p113 = scmp.eq.s32.totalorder %s21, 0
      %p114 = por %p112, %p113
      %p115 = scmp.ne.s32.totalorder %s107, %s109
      %p116 = scmp.eq.s32.totalorder %s26, 1
      %p117 = por %p115, %p116
      %p118 = scmp.ne.s32.totalorder %s109, %s110
      %p119 = scmp.eq.s32.totalorder %s26, 0
      %p120 = por %p118, %p119
      %p121 = scmp.ne.s32.totalorder %s109, %s110
      %p122 = scmp.eq.s32.totalorder %s27, 1
      %p123 = por %p121, %p122
      %p125 = scmp.ne.s32.totalorder %s110, %s124
      %p126 = scmp.eq.s32.totalorder %s27, 0
      %p127 = por %p125, %p126
      %s129 = sadd.s32 %s128, 1
      %p132 = scmp.eq.s32.totalorder %s21, 1
      %p133 = scmp.ne.s32.totalorder %s128, %s130
      %p134 = scmp.eq.s32.totalorder %s21, 0
      %p135 = por %p133, %p134
      %p136 = scmp.ne.s32.totalorder %s128, %s130
      %p137 = scmp.eq.s32.totalorder %s26, 1
      %p138 = por %p136, %p137
      %p139 = scmp.ne.s32.totalorder %s130, %s131
      %p140 = scmp.eq.s32.totalorder %s26, 0
      %p141 = por %p139, %p140
      %p142 = scmp.ne.s32.totalorder %s130, %s131
      %p143 = scmp.eq.s32.totalorder %s27, 1
      %p144 = por %p142, %p143
      %p146 = scmp.ne.s32.totalorder %s131, %s145
      %p147 = scmp.eq.s32.totalorder %s27, 0
      %p148 = por %p146, %p147
      %s149 = ssub.s32 %s21, %s28
      %p150 = scmp.eq.s32.totalorder %s149, 0
      %s152 = sadd.s32 %s151, 1
      %s153 = scalar_select %p150, %s151, %s152
      %p156 = pneg %p150
      %p157 = scmp.eq.s32.totalorder %s21, 1
      %p158 = por %p156, %p157
      %p159 = scmp.ne.s32.totalorder %s151, %s154
      %p160 = scmp.eq.s32.totalorder %s21, 0
      %p161 = por %p159, %p160
      %p162 = scmp.ne.s32.totalorder %s151, %s154
      %p163 = scmp.eq.s32.totalorder %s26, 1
      %p164 = por %p162, %p163
      %p165 = scmp.ne.s32.totalorder %s154, %s155
      %p166 = scmp.eq.s32.totalorder %s26, 0
      %p167 = por %p165, %p166
      %p168 = scmp.ne.s32.totalorder %s154, %s155
      %p169 = scmp.eq.s32.totalorder %s27, 1
      %p170 = por %p168, %p169
      %p172 = scmp.ne.s32.totalorder %s155, %s171
      %p173 = scmp.eq.s32.totalorder %s27, 0
      %p174 = por %p172, %p173
      %s175 = ssub.s32 %s21, %s28
      %p176 = scmp.eq.s32.totalorder %s175, 0
      %s178 = sadd.s32 %s177, 1
      %s179 = scalar_select %p176, %s177, %s178
      %p182 = pneg %p176
      %p183 = scmp.eq.s32.totalorder %s21, 1
      %p184 = por %p182, %p183
      %p185 = scmp.ne.s32.totalorder %s177, %s180
      %p186 = scmp.eq.s32.totalorder %s21, 0
      %p187 = por %p185, %p186
      %p188 = scmp.ne.s32.totalorder %s177, %s180
      %p189 = scmp.eq.s32.totalorder %s26, 1
      %p190 = por %p188, %p189
      %p191 = scmp.ne.s32.totalorder %s180, %s181
      %p192 = scmp.eq.s32.totalorder %s26, 0
      %p193 = por %p191, %p192
      %p194 = scmp.ne.s32.totalorder %s180, %s181
      %p195 = scmp.eq.s32.totalorder %s27, 1
      %p196 = por %p194, %p195
      %p198 = scmp.ne.s32.totalorder %s181, %s197
      %p199 = scmp.eq.s32.totalorder %s27, 0
      %p200 = por %p198, %p199
      %s201 = ssub.s32 %s21, %s28
      %p202 = scmp.eq.s32.totalorder %s201, 0
      %s204 = sadd.s32 %s203, 1
      %s205 = scalar_select %p202, %s203, %s204
      %p208 = pneg %p202
      %p209 = scmp.eq.s32.totalorder %s21, 1
      %p210 = por %p208, %p209
      %p211 = scmp.ne.s32.totalorder %s203, %s206
      %p212 = scmp.eq.s32.totalorder %s21, 0
      %p213 = por %p211, %p212
      %p214 = scmp.ne.s32.totalorder %s203, %s206
      %p215 = scmp.eq.s32.totalorder %s26, 1
      %p216 = por %p214, %p215
      %p217 = scmp.ne.s32.totalorder %s206, %s207
      %p218 = scmp.eq.s32.totalorder %s26, 0
      %p219 = por %p217, %p218
      %p220 = scmp.ne.s32.totalorder %s206, %s207
      %p221 = scmp.eq.s32.totalorder %s27, 1
      %p222 = por %p220, %p221
      %p224 = scmp.ne.s32.totalorder %s207, %s223
      %p225 = scmp.eq.s32.totalorder %s27, 0
      %p226 = por %p224, %p225
      %s227 = ssub.s32 %s21, %s28
      %p228 = scmp.eq.s32.totalorder %s227, 0
      %s230 = sadd.s32 %s229, 1
      %s231 = scalar_select %p228, %s229, %s230
      %p234 = pneg %p228
      %p235 = scmp.eq.s32.totalorder %s21, 1
      %p236 = por %p234, %p235
      %p237 = scmp.ne.s32.totalorder %s229, %s232
      %p238 = scmp.eq.s32.totalorder %s21, 0
      %p239 = por %p237, %p238
      %p240 = scmp.ne.s32.totalorder %s229, %s232
      %p241 = scmp.eq.s32.totalorder %s26, 1
      %p242 = por %p240, %p241
      %p243 = scmp.ne.s32.totalorder %s232, %s233
      %p244 = scmp.eq.s32.totalorder %s26, 0
      %p245 = por %p243, %p244
      %p246 = scmp.ne.s32.totalorder %s232, %s233
      %p247 = scmp.eq.s32.totalorder %s27, 1
      %p248 = por %p246, %p247
      %p250 = scmp.ne.s32.totalorder %s233, %s249
      %p251 = scmp.eq.s32.totalorder %s27, 0
      %p252 = por %p250, %p251
      %p253 = scmp.le.s32.totalorder 1, %s21
      %p254 = scmp.lt.s32.totalorder %s21, 3
      %p255 = pnand %p253, %p254
      %p256 = pneg %p255
      // Predicated region
      $region9: #{dense_mincut_pool_forward.1} parent=5 // pred_check
        _
      $region10: #{dense_mincut_pool_forward.1} parent=5 // pred_check_branch
        %258 = sbr.rel (%p255) target = $region12
      $region11: #{dense_mincut_pool_forward.1} parent=5 // pred_region
        %s259 = ssub.s32 %s21, 1
        // Predicated region
        $region13: #{dense_mincut_pool_forward.1} parent=11 // pred_check
          %p260 = pneg %p120
        $region14: #{dense_mincut_pool_forward.1} parent=11 // pred_check_branch
          %262 = sbr.rel (%p260) target = $region16
        $region15: #{dense_mincut_pool_forward.1} parent=11 // pred_region
          _
        $region16: #{dense_mincut_pool_forward.1} parent=11 // pred_fallthru
          _
        // Predicated region
        $region17: #{dense_mincut_pool_forward.1} parent=11 // pred_check
          %p263 = pneg %p141
        $region18: #{dense_mincut_pool_forward.1} parent=11 // pred_check_branch
          %265 = sbr.rel (%p263) target = $region20
        $region19: #{dense_mincut_pool_forward.1} parent=11 // pred_region
          _
        $region20: #{dense_mincut_pool_forward.1} parent=11 // pred_fallthru
          _
      $region12: #{dense_mincut_pool_forward.1} parent=5 // pred_fallthru
        _
      %p266 = scmp.lt.s32.totalorder %s21, 2
      // Predicated region
      $region21: #{dense_mincut_pool_forward.1} parent=5 // pred_check
        %p267 = pneg %p266
      $region22: #{dense_mincut_pool_forward.1} parent=5 // pred_check_branch
        %269 = sbr.rel (%p267) target = $region24
      $region23: #{dense_mincut_pool_forward.1} parent=5 // pred_region
        // Predicated region
        $region25: #{dense_mincut_pool_forward.1} parent=23 // pred_check
          %p270 = pneg %p41
        $region26: #{dense_mincut_pool_forward.1} parent=23 // pred_check_branch
          %272 = sbr.rel (%p270) target = $region28
        $region27: #{dense_mincut_pool_forward.1} parent=23 // pred_region
          %p273 = scmp.lt.s32.totalorder %s21, 1
          %s274 = scalar_select %p273, %s21, 1
          %s275 = smul.addr %s274, 2
          %s276 = smul.addr %s275, 8
          %s277 = scalar_lea.vmem %s0, %s276
        $region28: #{dense_mincut_pool_forward.1} parent=23 // pred_fallthru
          _
        // Predicated region
        $region29: #{dense_mincut_pool_forward.1} parent=23 // pred_check
          %p278 = pneg %p67
        $region30: #{dense_mincut_pool_forward.1} parent=23 // pred_check_branch
          %280 = sbr.rel (%p278) target = $region32
        $region31: #{dense_mincut_pool_forward.1} parent=23 // pred_region
          %p281 = scmp.lt.s32.totalorder %s21, 1
          %s282 = scalar_select %p281, %s21, 1
          %s283 = smul.addr %s282, 2
          %s284 = smul.addr %s283, 8
          %s285 = scalar_lea.vmem %s1, %s284
        $region32: #{dense_mincut_pool_forward.1} parent=23 // pred_fallthru
          _
        // Predicated region
        $region33: #{dense_mincut_pool_forward.1} parent=23 // pred_check
          %p286 = pneg %p93
        $region34: #{dense_mincut_pool_forward.1} parent=23 // pred_check_branch
          %288 = sbr.rel (%p286) target = $region36
        $region35: #{dense_mincut_pool_forward.1} parent=23 // pred_region
          %p289 = scmp.lt.s32.totalorder %s21, 1
          %s290 = scalar_select %p289, %s21, 1
          %s291 = smul.addr %s290, 2
          %s292 = smul.addr %s291, 8
          %s293 = scalar_lea.vmem %s2, %s292
        $region36: #{dense_mincut_pool_forward.1} parent=23 // pred_fallthru
          _
      $region24: #{dense_mincut_pool_forward.1} parent=5 // pred_fallthru
        _
      %p294 = scmp.le.s32.totalorder 1, %s21
      %p295 = scmp.lt.s32.totalorder %s21, 3
      %p296 = pnand %p294, %p295
      %p297 = pneg %p296
      // Predicated region
      $region37: #{dense_mincut_pool_forward.1} parent=5 // pred_check
        _
      $region38: #{dense_mincut_pool_forward.1} parent=5 // pred_check_branch
        %299 = sbr.rel (%p296) target = $region40
      $region39: #{dense_mincut_pool_forward.1} parent=5 // pred_region
        %s300 = ssub.s32 %s21, 1
        %p301 = scmp.lt.s32.totalorder %s26, 1
        %s302 = scalar_select %p301, %s26, 1
        %s303 = smul.addr %s302, 2
        %s304 = smul.addr %s303, 8
        %s305 = scalar_lea.vmem %s0, %s304
        %p306 = pneg %p47
        %p307 = pneg %p44
        %p308 = scmp.lt.s32.totalorder %s26, 1
        %s309 = scalar_select %p308, %s26, 1
        %s310 = smul.addr %s309, 2
        %s311 = smul.addr %s310, 8
        %s312 = scalar_lea.vmem %s1, %s311
        %p313 = pneg %p73
        %p314 = pneg %p70
        %p315 = scmp.lt.s32.totalorder %s26, 1
        %s316 = scalar_select %p315, %s26, 1
        %s317 = smul.addr %s316, 2
        %s318 = smul.addr %s317, 8
        %s319 = scalar_lea.vmem %s2, %s318
        %p320 = pneg %p99
        %p321 = pneg %p96
        %p322 = pneg %p120
        %p323 = pneg %p117
        %p324 = pneg %p141
        %p325 = pneg %p138
        %p326 = pneg %p167
        %p327 = pneg %p164
        %p328 = scmp.lt.s32.totalorder %s26, 1
        %s329 = scalar_select %p328, %s26, 1
        %s330 = smul.addr %s329, 2
        %s331 = smul.addr %s330, 8
        %s332 = scalar_lea.vmem %s5, %s331
        %p333 = pneg %p193
        %p334 = pneg %p190
        %s335 = sand.u32 %s180, 1
        %s336 = scalar_lea.sflag [#allocation3], %s335
        %s337 = sand.u32 %s180, 1
        %s338 = smul.addr %s337, 8
        %s339 = scalar_lea.vmem [#allocation2], %s338
        %p340 = pneg %p219
        %p341 = pneg %p216
        %s342 = sand.u32 %s206, 1
        %s343 = scalar_lea.sflag [#allocation5], %s342
        %s344 = sand.u32 %s206, 1
        %s345 = smul.addr %s344, 8
        %s346 = scalar_lea.vmem [#allocation4], %s345
        %p347 = pneg %p245
        %p348 = pneg %p242
        %p349 = scmp.lt.s32.totalorder %s26, 1
        %s350 = scalar_select %p349, %s26, 1
        %s351 = scalar_lea.vmem %s8, %s350
        %p352 = scmp.lt.s32.totalorder %s26, 1
        %s353 = scalar_select %p352, %s26, 1
        %s354 = smul.addr %s353, 2
        %s355 = smul.addr %s354, 8
        %s356 = scalar_lea.vmem %s0, %s355
        %p357 = scmp.lt.s32.totalorder %s26, 1
        %s358 = scalar_select %p357, %s26, 1
        %s359 = smul.addr %s358, 2
        %s360 = smul.addr %s359, 8
        %s361 = scalar_lea.vmem %s1, %s360
        %p362 = scmp.lt.s32.totalorder %s26, 1
        %s363 = scalar_select %p362, %s26, 1
        %s364 = smul.addr %s363, 2
        %s365 = smul.addr %s364, 8
        %s366 = scalar_lea.vmem %s2, %s365
        %p367 = scmp.lt.s32.totalorder %s26, 1
        %s368 = scalar_select %p367, %s26, 1
        %s369 = smul.addr %s368, 2
        %s370 = smul.addr %s369, 8
        %s371 = scalar_lea.vmem %s5, %s370
        %p372 = scmp.lt.s32.totalorder %s26, 1
        %s373 = scalar_select %p372, %s26, 1
        %s374 = scalar_lea.vmem %s8, %s373
        %v376 = vld [vmem:[%s356] sm:$0xff]
        %v377 = vld [vmem:[%s356 + $0x8] sm:$0xff]
        %v378 = vld [vmem:[%s361] sm:$0xff]
        %v379 = vld [vmem:[%s361 + $0x8] sm:$0xff]
        %v380 = vld [vmem:[%s366] sm:$0xff]
        %v381 = vld [vmem:[%s366 + $0x8] sm:$0xff]
        %v382 = vld [vmem:[%s3] sm:$0xff]
        %v383 = vld [vmem:[%s3 + $0x8] sm:$0xff]
        %v384 = vld [vmem:[%s3 + $0x10] sm:$0xff]
        %v385 = vld [vmem:[%s3 + $0x18] sm:$0xff]
        %v386 = vld [vmem:[%s4] sm:$0x1]
        %v388 = vperm.slane %v386, 0
        %vm390 = vcmask 261120
        %v392 = vsel %vm390, %v376, 0
        %v395 = vsel %vm390, %v377, 0
        %397 = vmatpush.msra.mxu0 0.0
        %398 = vmatpush.msra.mxu0 0.0
        %399 = vmatpush.msra.mxu0 0.0
        %400 = vmatpush.msra.mxu0 0.0
        %401 = vmatpush.msra.mxu0 0.0
        %402 = vmatpush.msra.mxu0 0.0
        %403 = vmatpush.msra.mxu0 0.0
        %404 = vmatpush.msra.mxu0 0.0
        %405 = vmatpush.msra.mxu0 0.0
        %406 = vmatpush.msra.mxu0 0.0
        %407 = vmatpush.msra.mxu0 0.0
        %408 = vmatpush.msra.mxu0 0.0
        %409 = vmatpush.msra.mxu0 %v385
        %410 = vmatpush.msra.mxu0 %v384
        %411 = vmatpush.msra.mxu0 %v383
        %412 = vmatpush.msra.mxu0 %v382
        %413 = vmatmul.f32.gmra.mxu0 %v392
        %v414 = vpop.f32.mrf.mxu0
        %v415 = vadd.f32 %v388, %v414
        %416 = vmatmul.f32.gmra.mxu0 %v395
        %v417 = vpop.f32.mrf.mxu0
        %v418 = vadd.f32 %v388, %v417
        %419 = vdwg.mxu0
        %vm420 = vcmask 64512
        %421 = vst.msk [vmem:[%s371] sm:$0xff] %vm420, %v415
        %422 = vst.msk [vmem:[%s371 + $0x8] sm:$0xff] %vm420, %v418
        %v423 = vsel %vm420, %v415, -inf
        %424 = vmax.xlane.f32.xlu0 %v423
        %v425 = vpop.xlane.xlu0 %424
        %v426 = vsel %vm420, %v418, -inf
        %427 = vmax.xlane.f32.xlu0 %v426
        %v428 = vpop.xlane.xlu0 %427
        %v429 = vsub.f32 %v415, %v425
        %v430 = vsub.f32 %v418, %v428
        %v431 = vmul.f32 %v429, 1.442695
        %v432 = vpow.pop %v431
        %v433 = vmul.f32 %v430, 1.442695
        %v434 = vpow.pop %v433
        %v435 = vsel %vm420, %v432, 0.0
        %436 = vadd.xlane.f32.xlu0 %v435
        %v437 = vpop.xlane.xlu0 %436
        %v438 = vsel %vm420, %v434, 0.0
        %439 = vadd.xlane.f32.xlu0 %v438
        %v440 = vpop.xlane.xlu0 %439
        %v441 = vrcp.pop %v437
        %v442 = vrcp.pop %v440
        %v443 = vmul.f32 %v432, %v441
        %v444 = vmul.f32 %v434, %v442
        %446 = vset.pattern.permute.xlu0 0
        %447 = vperm.xlu0 %446, %v380
        %v448 = vpop.permute.xlu0 %447
        %451 = vset.pattern.permute.xlu0 0
        %452 = vperm.xlu0 %451, %v381
        %v453 = vpop.permute.xlu0 %452
        %v455 = vmul.f32 %v376, %v448
        %v456 = vmul.f32 %v377, %v453
        %v457 = vmul.f32 %v443, %v448
        %v458 = vmul.f32 %v444, %v453
        %v459 = vpack.c.bf16 %v458, %v457
        %v460 = vpack.c.bf16 %v456, %v455
        %v461 = vpack.c.bf16 %v379, %v378
        %462 = vxpose.xlu0.c.b16.start [1/8] %v459, 128
        %463 = vxpose.xlu0.c.b16.cont [2/8] 0, 128
        %464 = vxpose.xlu0.c.b16.cont [3/8] 0, 128
        %465 = vxpose.xlu0.c.b16.cont [4/8] 0, 128
        %466 = vxpose.xlu0.c.b16.cont [5/8] 0, 128
        %467 = vxpose.xlu0.c.b16.cont [6/8] 0, 128
        %468 = vxpose.xlu0.c.b16.cont [7/8] 0, 128
        %469 = vxpose.xlu0.c.b16.end [8/8] 0, 128
        %v470 = vpop.trf.xlu0
        %v471 = vpop.trf.xlu0
        %v472 = vpop.trf.xlu0
        %v473 = vpop.trf.xlu0
        %v474 = vpop.trf.xlu0
        %v475 = vpop.trf.xlu0
        %v476 = vpop.trf.xlu0
        %v477 = vpop.trf.xlu0
        %vm478 = vcmask 130048
        %v480 = vsel %vm478, %v470, 0
        %482 = vmatpush.bf16.msra.mxu0 0
        %483 = vmatpush.bf16.msra.mxu0 0
        %484 = vmatpush.bf16.msra.mxu0 0
        %485 = vmatpush.bf16.msra.mxu0 0
        %486 = vmatpush.bf16.msra.mxu0 0
        %487 = vmatpush.bf16.msra.mxu0 0
        %488 = vmatpush.bf16.msra.mxu0 0
        %489 = vmatpush.bf16.msra.mxu0 %v460
        %490 = vmatmul.bf16.gmra.mxu0 %v480
        %v491 = vpop.f32.mrf.mxu0
        %v492 = vadd.f32 0.0, %v491
        %v493 = vpop.f32.mrf.mxu0
        %494 = vdwg.mxu0
        %v496 = vsel %vm478, %v461, 0
        %498 = vmatpush.bf16.msra.mxu0 0
        %499 = vmatpush.bf16.msra.mxu0 0
        %500 = vmatpush.bf16.msra.mxu0 0
        %501 = vmatpush.bf16.msra.mxu0 0
        %502 = vmatpush.bf16.msra.mxu0 0
        %503 = vmatpush.bf16.msra.mxu0 0
        %504 = vmatpush.bf16.msra.mxu0 0
        %505 = vmatpush.bf16.msra.mxu0 %v459
        %506 = vmatmul.bf16.gmra.mxu0 %v496
        %v507 = vpop.f32.mrf.mxu0
        %v508 = vadd.f32 0.0, %v507
        %v509 = vpop.f32.mrf.mxu0
        %v510 = vadd.f32 0.0, %v509
        %511 = vdwg.mxu0
        %v512 = vpack.c.bf16 %v510, %v508
        %513 = vmatpush.bf16.msra.mxu0 0
        %514 = vmatpush.bf16.msra.mxu0 0
        %515 = vmatpush.bf16.msra.mxu0 0
        %516 = vmatpush.bf16.msra.mxu0 0
        %517 = vmatpush.bf16.msra.mxu0 0
        %518 = vmatpush.bf16.msra.mxu0 0
        %519 = vmatpush.bf16.msra.mxu0 0
        %520 = vmatpush.bf16.msra.mxu0 %v512
        %521 = vmatmul.bf16.gmra.mxu0 %v480
        %v522 = vpop.f32.mrf.mxu0
        %v523 = vadd.f32 0.0, %v522
        %v524 = vpop.f32.mrf.mxu0
        %525 = vdwg.mxu0
        %526 = vmatpush.bf16.msra.mxu0 0
        %527 = vmatpush.bf16.msra.mxu0 0
        %528 = vmatpush.bf16.msra.mxu0 0
        %529 = vmatpush.bf16.msra.mxu0 0
        %530 = vmatpush.bf16.msra.mxu0 0
        %531 = vmatpush.bf16.msra.mxu0 0
        %532 = vmatpush.bf16.msra.mxu0 0
        %533 = vmatpush.bf16.msra.mxu0 %v459
        %534 = vmatmul.bf16.gmra.mxu0 %v480
        %v535 = vpop.f32.mrf.mxu0
        %v536 = vadd.f32 0.0, %v535
        %v537 = vpop.f32.mrf.mxu0
        %538 = vdwg.mxu0
        %v539 = vlaneseq
        %v540 = vshrl.u32 %v539, 7
        %v541 = vlaneseq
        %v542 = vand.u32 %v541, 127
        %vm543 = vcmp.eq.s32.totalorder %v540, %v542
        %v544 = vsel %vm543, 1, 0
        %v545 = vcvt.s32.f32 %v544
        %v546 = vmul.f32 %v523, %v545
        %v547 = vsel %vm420, %v546, 0.0
        %548 = vadd.xlane.f32.xlu0 %v547
        %v549 = vpop.xlane.xlu0 %548
        %v550 = vrot.slane %v549, 4
        %v551 = vadd.f32 %v549, %v550
        %v552 = vrot.slane %v551, 2
        %v553 = vadd.f32 %v551, %v552
        %v554 = vrot.slane %v553, 1
        %v555 = vadd.f32 %v553, %v554
        %s556 = vtos %v555
        %v557 = vsel %vm478, %v378, 0.0
        %558 = vadd.xlane.f32.xlu0 %v557
        %v559 = vpop.xlane.xlu0 %558
        %v560 = vsel %vm478, %v379, 0.0
        %561 = vadd.xlane.f32.xlu0 %v560
        %v562 = vpop.xlane.xlu0 %561
        %v563 = vmul.f32 %v457, %v457
        %v564 = vmul.f32 %v458, %v458
        %v565 = vsel %vm420, %v563, 0.0
        %566 = vadd.xlane.f32.xlu0 %v565
        %v567 = vpop.xlane.xlu0 %566
        %v568 = vsel %vm420, %v564, 0.0
        %569 = vadd.xlane.f32.xlu0 %v568
        %v570 = vpop.xlane.xlu0 %569
        %v571 = vmul.f32 %v559, %v567
        %v572 = vmul.f32 %v562, %v570
        %vm573 = vcmask 7168
        %v574 = vsel %vm573, %v571, 0.0
        %v575 = vsel %vm573, %v572, 0.0
        %v576 = vadd.f32 %v574, %v575
        %577 = vadd.xlane.f32.xlu0 %v576
        %v578 = vpop.xlane.xlu0 %577
        %v579 = vrot.slane %v578, 4
        %v580 = vadd.f32 %v578, %v579
        %v581 = vrot.slane %v580, 2
        %v582 = vadd.f32 %v580, %v581
        %v583 = vrot.slane %v582, 1
        %v584 = vadd.f32 %v582, %v583
        %s585 = vtos %v584
        %v586 = vmul.f32 %v536, %v536
        %v587 = vsel %vm420, %v586, 0.0
        %588 = vadd.xlane.f32.xlu0 %v587
        %v589 = vpop.xlane.xlu0 %588
        %v590 = vrot.slane %v589, 4
        %v591 = vadd.f32 %v589, %v590
        %v592 = vrot.slane %v591, 2
        %v593 = vadd.f32 %v591, %v592
        %v594 = vrot.slane %v593, 1
        %v595 = vadd.f32 %v593, %v594
        %s596 = vtos %v595
        %v597 = vstv %s596
        %v598 = vrsqrt.pop %v597
        %v599 = vmul.f32 %v598, %v597
        %v600 = vmul.f32 %v599, %v598
        %v601 = vmul.f32 0.5, %v600
        %v602 = vsub.f32 1.5, %v601
        %v603 = vmul.f32 %v598, %v602
        %v604 = vmul.f32 %v597, %v603
        %vm605 = vcmp.eq.f32.partialorder %v597, inf
        %v606 = vsel %vm605, %v597, %v604
        %vm607 = vcmp.eq.f32.partialorder %v597, 0.0
        %v608 = vand.u32 %v597, 2147483648
        %v609 = vsel %vm607, %v608, %v606
        %v610 = vmax.f32 %v609, 1e-15
        %v611 = vrcp.pop %v610
        %v612 = vmul.f32 %v536, %v611
        %v613 = vmul.f32 %v545, 0.35355338
        %v614 = vsub.f32 %v612, %v613
        %v615 = vmul.f32 %v614, %v614
        %v616 = vsel %vm420, %v615, 0.0
        %617 = vadd.xlane.f32.xlu0 %v616
        %v618 = vpop.xlane.xlu0 %617
        %v619 = vrot.slane %v618, 4
        %v620 = vadd.f32 %v618, %v619
        %v621 = vrot.slane %v620, 2
        %v622 = vadd.f32 %v620, %v621
        %v623 = vrot.slane %v622, 1
        %v624 = vadd.f32 %v622, %v623
        %s625 = vtos %v624
        %v626 = vstv %s625
        %v627 = vrsqrt.pop %v626
        %v628 = vmul.f32 %v627, %v626
        %v629 = vmul.f32 %v628, %v627
        %v630 = vmul.f32 0.5, %v629
        %v631 = vsub.f32 1.5, %v630
        %v632 = vmul.f32 %v627, %v631
        %v633 = vmul.f32 %v626, %v632
        %vm634 = vcmp.eq.f32.partialorder %v626, inf
        %v635 = vsel %vm634, %v626, %v633
        %vm636 = vcmp.eq.f32.partialorder %v626, 0.0
        %v637 = vand.u32 %v626, 2147483648
        %v638 = vsel %vm636, %v637, %v635
        %s639 = vtos %v638
        %v640 = vsub.f32 1.0, %v545
        %v641 = vmul.f32 %v523, %v640
        %v642 = vsel %vm420, %v641, 0.0
        %643 = vadd.xlane.f32.xlu0 %v642
        %v644 = vpop.xlane.xlu0 %643
        %v646 = vsel %vm420, 1.0, 0
        %v649 = vsel %vm420, %v641, 0
        %651 = vmatpush.xpose.msra.mxu0 0.0
        %652 = vmatpush.xpose.msra.mxu0 0.0
        %653 = vmatpush.xpose.msra.mxu0 0.0
        %654 = vmatpush.xpose.msra.mxu0 0.0
        %655 = vmatpush.xpose.msra.mxu0 0.0
        %656 = vmatpush.xpose.msra.mxu0 0.0
        %657 = vmatpush.xpose.msra.mxu0 0.0
        %658 = vmatpush.xpose.msra.mxu0 0.0
        %659 = vmatpush.xpose.msra.mxu0 0.0
        %660 = vmatpush.xpose.msra.mxu0 0.0
        %661 = vmatpush.xpose.msra.mxu0 0.0
        %662 = vmatpush.xpose.msra.mxu0 0.0
        %663 = vmatpush.xpose.msra.mxu0 0.0
        %664 = vmatpush.xpose.msra.mxu0 0.0
        %665 = vmatpush.xpose.msra.mxu0 0.0
        %666 = vmatpush.xpose.msra.mxu0 %v649
        %667 = vmatmul.f32.gmra.mxu0 %v646
        %v668 = vpop.f32.mrf.mxu0
        %v669 = vadd.f32 0.0, %v668
        %670 = vdwg.mxu0
        %v671 = vrsqrt.pop %v644
        %v672 = vmul.f32 %v671, %v644
        %v673 = vmul.f32 %v672, %v671
        %v674 = vmul.f32 0.5, %v673
        %v675 = vsub.f32 1.5, %v674
        %v676 = vmul.f32 %v671, %v675
        %v677 = vmul.f32 %v644, %v676
        %vm678 = vcmp.eq.f32.partialorder %v644, inf
        %v679 = vsel %vm678, %v644, %v677
        %vm680 = vcmp.eq.f32.partialorder %v644, 0.0
        %v681 = vand.u32 %v644, 2147483648
        %v682 = vsel %vm680, %v681, %v679
        %v683 = vadd.f32 %v682, 1e-15
        %v684 = vrcp.pop %v683
        %v685 = vmul.f32 %v683, %v684
        %v686 = vsub.f32 1.0, %v685
        %v687 = vmul.f32 %v684, %v686
        %v688 = vadd.f32 %v684, %v687
        %vm689 = vweird.f32 %v683
        %vm690 = vweird.f32 %v684
        %vm691 = vmor %vm689, %vm690
        %v692 = vsel %vm691, %v684, %v688
        %v693 = vand.u32 2147483647, %v683
        %vm694 = vcmp.eq.f32.partialorder %v693, 8.507059e+37
        %v695 = vand.u32 %v683, 2147483648
        %v696 = vor.u32 1.1754944e-38, %v695
        %v697 = vsel %vm694, %v696, %v692
        %v698 = vrsqrt.pop %v669
        %v699 = vmul.f32 %v698, %v669
        %v700 = vmul.f32 %v699, %v698
        %v701 = vmul.f32 0.5, %v700
        %v702 = vsub.f32 1.5, %v701
        %v703 = vmul.f32 %v698, %v702
        %v704 = vmul.f32 %v669, %v703
        %vm705 = vcmp.eq.f32.partialorder %v669, inf
        %v706 = vsel %vm705, %v669, %v704
        %vm707 = vcmp.eq.f32.partialorder %v669, 0.0
        %v708 = vand.u32 %v669, 2147483648
        %v709 = vsel %vm707, %v708, %v706
        %v710 = vadd.f32 %v709, 1e-15
        %v711 = vrcp.pop %v710
        %v712 = vmul.f32 %v710, %v711
        %v713 = vsub.f32 1.0, %v712
        %v714 = vmul.f32 %v711, %v713
        %v715 = vadd.f32 %v711, %v714
        %vm716 = vweird.f32 %v710
        %vm717 = vweird.f32 %v711
        %vm718 = vmor %vm716, %vm717
        %v719 = vsel %vm718, %v711, %v715
        %v720 = vand.u32 2147483647, %v710
        %vm721 = vcmp.eq.f32.partialorder %v720, 8.507059e+37
        %v722 = vand.u32 %v710, 2147483648
        %v723 = vor.u32 1.1754944e-38, %v722
        %v724 = vsel %vm721, %v723, %v719
        %v725 = vmul.f32 %v641, %v697
        %v726 = vperm.slane %v724, 0
        %v727 = vmul.f32 %v725, %v726
        %728 = vst.msk [vmem:[%s339] sm:$0xff] %vm390, %v492
        %729 = vst.msk [vmem:[%s346] sm:$0xff] %vm420, %v727
        %vm730 = vcmp.eq.s32.totalorder %v542, 0
        %v731 = vstv %s556
        %v732 = vsel %vm730, %v731, 0.0
        %vm733 = vcmp.eq.s32.totalorder %v542, 1
        %v734 = vstv %s585
        %v735 = vsel %vm733, %v734, 0.0
        %v736 = vadd.f32 %v732, %v735
        %vm737 = vcmp.eq.s32.totalorder %v542, 2
        %v738 = vstv %s639
        %v739 = vsel %vm737, %v738, 0.0
        %v740 = vadd.f32 %v736, %v739
        %741 = vst [vmem:[%s374] sm:$0x1] %v740
        %p742 = scmp.lt.s32.totalorder %s26, 1
        %s743 = scalar_select %p742, %s26, 1
        %s744 = smul.addr %s743, 2
        %s745 = smul.addr %s744, 8
        %s746 = scalar_lea.vmem %s5, %s745
        %s747 = sand.u32 %s180, 1
        %s748 = scalar_lea.sflag [#allocation3], %s747
        %s749 = sand.u32 %s180, 1
        %s750 = smul.addr %s749, 8
        %s751 = scalar_lea.vmem [#allocation2], %s750
        %s752 = sand.u32 %s206, 1
        %s753 = scalar_lea.sflag [#allocation5], %s752
        %s754 = sand.u32 %s206, 1
        %s755 = smul.addr %s754, 8
        %s756 = scalar_lea.vmem [#allocation4], %s755
        %p757 = scmp.lt.s32.totalorder %s26, 1
        %s758 = scalar_select %p757, %s26, 1
        %s759 = scalar_lea.vmem %s8, %s758
        // Predicated region
        $region41: #{dense_mincut_pool_forward.1} parent=39 // pred_check
          %p760 = pneg %p164
        $region42: #{dense_mincut_pool_forward.1} parent=39 // pred_check_branch
          %762 = sbr.rel (%p760) target = $region44
        $region43: #{dense_mincut_pool_forward.1} parent=39 // pred_region
          _
        $region44: #{dense_mincut_pool_forward.1} parent=39 // pred_fallthru
          _
        // Predicated region
        $region45: #{dense_mincut_pool_forward.1} parent=39 // pred_check
          %p763 = pneg %p190
        $region46: #{dense_mincut_pool_forward.1} parent=39 // pred_check_branch
          %765 = sbr.rel (%p763) target = $region48
        $region47: #{dense_mincut_pool_forward.1} parent=39 // pred_region
          %767 = vsyncadd %s748, 0
          %s768 = smul.addr %s26, 8
          %s769 = scalar_lea.hbm %s6, %s768
          %s771 = sshll.u32 %s751, 4
          %s772 = int_to_ptr.vmem [resolvable:$true] %s771
          %s773 = sshll.u32 %s769, 4
          %s774 = int_to_ptr.hbm [resolvable:$true] %s773
          %776 = dma.vmem_to_hbm [thread:$0]  %s772, 128, %s774, %s748
        $region48: #{dense_mincut_pool_forward.1} parent=39 // pred_fallthru
          _
        // Predicated region
        $region49: #{dense_mincut_pool_forward.1} parent=39 // pred_check
          %p777 = pneg %p216
        $region50: #{dense_mincut_pool_forward.1} parent=39 // pred_check_branch
          %779 = sbr.rel (%p777) target = $region52
        $region51: #{dense_mincut_pool_forward.1} parent=39 // pred_region
          %781 = vsyncadd %s753, 0
          %s782 = smul.addr %s26, 8
          %s783 = scalar_lea.hbm %s7, %s782
          %s785 = sshll.u32 %s756, 4
          %s786 = int_to_ptr.vmem [resolvable:$true] %s785
          %s787 = sshll.u32 %s783, 4
          %s788 = int_to_ptr.hbm [resolvable:$true] %s787
          %790 = dma.vmem_to_hbm [thread:$0]  %s786, 128, %s788, %s753
        $region52: #{dense_mincut_pool_forward.1} parent=39 // pred_fallthru
          _
        // Predicated region
        $region53: #{dense_mincut_pool_forward.1} parent=39 // pred_check
          %p791 = pneg %p242
        $region54: #{dense_mincut_pool_forward.1} parent=39 // pred_check_branch
          %793 = sbr.rel (%p791) target = $region56
        $region55: #{dense_mincut_pool_forward.1} parent=39 // pred_region
          _
        $region56: #{dense_mincut_pool_forward.1} parent=39 // pred_fallthru
          _
      $region40: #{dense_mincut_pool_forward.1} parent=5 // pred_fallthru
        _
      %p794 = scmp.le.s32.totalorder 2, %s21
      // Predicated region
      $region57: #{dense_mincut_pool_forward.1} parent=5 // pred_check
        %p795 = pneg %p794
      $region58: #{dense_mincut_pool_forward.1} parent=5 // pred_check_branch
        %797 = sbr.rel (%p795) target = $region60
      $region59: #{dense_mincut_pool_forward.1} parent=5 // pred_region
        %s798 = ssub.s32 %s21, 2
        // Predicated region
        $region61: #{dense_mincut_pool_forward.1} parent=59 // pred_check
          %p799 = pneg %p170
        $region62: #{dense_mincut_pool_forward.1} parent=59 // pred_check_branch
          %801 = sbr.rel (%p799) target = $region64
        $region63: #{dense_mincut_pool_forward.1} parent=59 // pred_region
          %p802 = scmp.lt.s32.totalorder %s27, 1
          %s803 = scalar_select %p802, %s27, 1
          %s804 = smul.addr %s803, 2
          %s805 = smul.addr %s804, 8
          %s806 = scalar_lea.vmem %s5, %s805
        $region64: #{dense_mincut_pool_forward.1} parent=59 // pred_fallthru
          _
        // Predicated region
        $region65: #{dense_mincut_pool_forward.1} parent=59 // pred_check
          %p807 = pneg %p196
        $region66: #{dense_mincut_pool_forward.1} parent=59 // pred_check_branch
          %809 = sbr.rel (%p807) target = $region68
        $region67: #{dense_mincut_pool_forward.1} parent=59 // pred_region
          %s810 = sand.u32 %s181, 1
          %s811 = scalar_lea.sflag [#allocation3], %s810
          %s812 = sand.u32 %s181, 1
          %s813 = smul.addr %s812, 8
          %s814 = scalar_lea.vmem [#allocation2], %s813
          %816 = dma.done %s811, 128
        $region68: #{dense_mincut_pool_forward.1} parent=59 // pred_fallthru
          _
        // Predicated region
        $region69: #{dense_mincut_pool_forward.1} parent=59 // pred_check
          %p817 = pneg %p222
        $region70: #{dense_mincut_pool_forward.1} parent=59 // pred_check_branch
          %819 = sbr.rel (%p817) target = $region72
        $region71: #{dense_mincut_pool_forward.1} parent=59 // pred_region
          %s820 = sand.u32 %s207, 1
          %s821 = scalar_lea.sflag [#allocation5], %s820
          %s822 = sand.u32 %s207, 1
          %s823 = smul.addr %s822, 8
          %s824 = scalar_lea.vmem [#allocation4], %s823
          %826 = dma.done %s821, 128
        $region72: #{dense_mincut_pool_forward.1} parent=59 // pred_fallthru
          _
        // Predicated region
        $region73: #{dense_mincut_pool_forward.1} parent=59 // pred_check
          %p827 = pneg %p248
        $region74: #{dense_mincut_pool_forward.1} parent=59 // pred_check_branch
          %829 = sbr.rel (%p827) target = $region76
        $region75: #{dense_mincut_pool_forward.1} parent=59 // pred_region
          %p830 = scmp.lt.s32.totalorder %s27, 1
          %s831 = scalar_select %p830, %s27, 1
          %s832 = scalar_lea.vmem %s8, %s831
        $region76: #{dense_mincut_pool_forward.1} parent=59 // pred_fallthru
          _
      $region60: #{dense_mincut_pool_forward.1} parent=5 // pred_fallthru
        _
    $region6: #{dense_mincut_pool_forward.1} parent=1 // loop_footer
      %s25 = sadd.s32 1, %s21
    $region7: #{dense_mincut_pool_forward.1} parent=1 // loop_footer_branch
      %20 = sbr.rel target = $region3
    $region8: #{dense_mincut_pool_forward.1} parent=1 // loop_exit
      _
    %833 = vsyncpa [#allocation3], 1
    %s834 = scalar_lea.sflag [#allocation3], 1
    %835 = vsyncpa %s834, 1
    %836 = vsyncpa [#allocation5], 1
    %s837 = scalar_lea.sflag [#allocation5], 1
    %838 = vsyncpa %s837, 1

</llo_original>
